<compile_context>
chip_gen: v7x
topology: tpu7x:2x2x1
jax: 0.10.0
libtpu: 0.0.40
codegen_flags: <defaults>
</compile_context>

<pallas_src>
import jax
import jax.numpy as jnp
from jax.experimental import pallas as pl
from jax.experimental.pallas import tpu as pltpu


def _round_up(x, m):
    return ((x + m - 1) // m) * m


def zeta_mlp_kernel(s_ref, z_ref, a_ref,
                    w1s_ref, w1z_ref, w1a_ref, b1_ref,
                    w2_ref, b2_ref, wzr_ref, out_ref):
    # ---- hidden layer 0: fused concat via split W1 row-slabs + bias + ReLU ----
    h = jnp.dot(s_ref[...], w1s_ref[...], preferred_element_type=jnp.float32)
    h = h + jnp.dot(z_ref[...], w1z_ref[...], preferred_element_type=jnp.float32)
    h = h + jnp.dot(a_ref[...], w1a_ref[...], preferred_element_type=jnp.float32)
    h = jnp.maximum(h + b1_ref[...], 0.0)

    # ---- hidden layer 1: Linear + bias + ReLU ----
    h = jnp.dot(h.astype(w2_ref.dtype), w2_ref[...],
                preferred_element_type=jnp.float32)
    h = jnp.maximum(h + b2_ref[...], 0.0)

    # ---- zeta head, lane-dense: (1, H2) . (TILE_B, H2)^T -> (1, TILE_B) ----
    zeta = jax.lax.dot_general(
        wzr_ref[...], h.astype(wzr_ref.dtype),
        dimension_numbers=(((1,), (1,)), ((), ())),
        preferred_element_type=jnp.float32)
    out_ref[...] = zeta.reshape(out_ref.shape).astype(out_ref.dtype)


def zeta_nn_forward(state, z, action, params, *,
                    tile_b=256, compute_dtype=jnp.float32):
    """Pallas implementation of Zeta_NN.forward (state_action=True, ReLU)."""
    w1, b1, w2, b2, wz, bz = params
    B, S = state.shape
    Zd = z.shape[1]
    A = action.shape[1]
    H1 = w1.shape[1]
    H2 = w2.shape[1]

    # Split W1 into per-input row-slabs so the concat fuses into the kernel.
    w1s = w1[:S].astype(compute_dtype)
    w1z = w1[S:S + Zd].astype(compute_dtype)
    w1a = w1[S + Zd:].astype(compute_dtype)
    w2c = w2.astype(compute_dtype)
    wzr = wz.reshape(1, H2).astype(compute_dtype)      # wz stored as (H2, 1)

    # Batch tiling: TILE_B rows per grid step (multiple of 8 sublanes), clamped
    # for tiny batches.  Weights stay VMEM-resident across all grid steps.
    tile_b = max(8, min(_round_up(tile_b, 8), _round_up(B, 8)))
    b_pad = _round_up(B, tile_b)
    num_tiles = pl.cdiv(b_pad, tile_b)

    def prep(x):
        x = x.astype(compute_dtype)
        if b_pad != B:
            x = jnp.pad(x, ((0, b_pad - B), (0, 0)))
        return x

    state_p, z_p, action_p = prep(state), prep(z), prep(action)

    def act_spec(d):       # batch-tiled activations
        return pl.BlockSpec((tile_b, d), lambda i: (i, 0))

    def res_spec(r, c):    # VMEM-resident weights / biases
        return pl.BlockSpec((r, c), lambda i: (0, 0))

    out_slab = pl.pallas_call(
        zeta_mlp_kernel,
        out_shape=jax.ShapeDtypeStruct((num_tiles, 1, tile_b), jnp.float32),
        grid_spec=pltpu.PrefetchScalarGridSpec(
            num_scalar_prefetch=0,
            grid=(num_tiles,),
            in_specs=[
                act_spec(S), act_spec(Zd), act_spec(A),
                res_spec(S, H1), res_spec(Zd, H1), res_spec(A, H1),
                res_spec(1, H1),
                res_spec(H1, H2), res_spec(1, H2),
                res_spec(1, H2),
            ],
            out_specs=pl.BlockSpec((1, 1, tile_b), lambda i: (i, 0, 0)),
        ),
        compiler_params=pltpu.CompilerParams(
            dimension_semantics=("parallel",)),
    )(state_p, z_p, action_p, w1s, w1z, w1a,
      b1.astype(jnp.float32), w2c, b2.astype(jnp.float32), wzr)

    # Lane-dense slab -> (B, 1); fold in the scalar head bias here.
    zeta = out_slab.reshape(b_pad, 1)[:B] + bz.reshape(1, 1)
    return zeta


def xavier_uniform(key, fan_in, fan_out):
    # matches torch.nn.init.xavier_uniform_ with gain=1
    limit = jnp.sqrt(6.0 / (fan_in + fan_out))
    # torch Linear weight is (out, in); we store transposed (in, out)
    return jax.random.uniform(key, (fan_in, fan_out), jnp.float32, -limit, limit)


def init_params(key, d_in, hidden_dims):
    """Xavier-uniform weights, zero biases (as in the module)."""
    params = []
    dims = [d_in] + list(hidden_dims)
    keys = jax.random.split(key, len(hidden_dims) + 1)
    for i, (fi, fo) in enumerate(zip(dims[:-1], dims[1:])):
        params += [xavier_uniform(keys[i], fi, fo), jnp.zeros((1, fo), jnp.float32)]
    params += [xavier_uniform(keys[-1], dims[-1], 1), jnp.zeros((1, 1), jnp.float32)]
    return tuple(params)


def reference_forward(state, z, action, params):
    w1, b1, w2, b2, wz, bz = params
    inp = jnp.concatenate([state, z, action], axis=1)
    h = jnp.maximum(inp @ w1 + b1, 0.0)
    h = jnp.maximum(h @ w2 + b2, 0.0)
    return h @ wz + bz


if __name__ == "__main__":
    # small shapes implied by the module: batch=8, state_dim=8, num_z=4, action_dim=4
    B, S, Z, A = 8, 8, 4, 4
    hidden = (32, 32)
    d_in = S + Z + A

    key = jax.random.PRNGKey(0)
    k_s, k_z, k_a, k_p = jax.random.split(key, 4)
    state = jax.random.normal(k_s, (B, S), jnp.float32)
    zvec = jax.random.normal(k_z, (B, Z), jnp.float32)
    action = jax.random.normal(k_a, (B, A), jnp.float32)

    params = init_params(k_p, d_in, hidden)
    ref = reference_forward(state, zvec, action, params)

    # f32 compute path (default).
    out = jax.block_until_ready(zeta_nn_forward(state, zvec, action, params))
    assert out.shape == (B, 1)
    assert jnp.allclose(out, ref, atol=1e-3, rtol=1e-3)

    # bf16 compute path (v6e/v7x throughput option): same kernel, loose tolerance.
    out_bf16 = jax.block_until_ready(
        zeta_nn_forward(state, zvec, action, params, compute_dtype=jnp.bfloat16))
    assert out_bf16.shape == (B, 1)
    assert float(jnp.max(jnp.abs(out_bf16 - ref))) < 0.15

    print("KERNEL_OK")
</pallas_src>

<mosaic_0001>
module attributes {stable_mosaic.version = 11 : i64} {
  func.func @zeta_mlp_kernel(%arg0: i32, %arg1: memref<8x8xf32, #tpu.memory_space<vmem>>, %arg2: memref<8x4xf32, #tpu.memory_space<vmem>>, %arg3: memref<8x4xf32, #tpu.memory_space<vmem>>, %arg4: memref<8x32xf32, #tpu.memory_space<vmem>>, %arg5: memref<4x32xf32, #tpu.memory_space<vmem>>, %arg6: memref<4x32xf32, #tpu.memory_space<vmem>>, %arg7: memref<1x32xf32, #tpu.memory_space<vmem>>, %arg8: memref<32x32xf32, #tpu.memory_space<vmem>>, %arg9: memref<1x32xf32, #tpu.memory_space<vmem>>, %arg10: memref<1x32xf32, #tpu.memory_space<vmem>>, %arg11: memref<1x1x8xf32, #tpu.memory_space<vmem>>) attributes {dimension_semantics = [#tpu.dimension_semantics<parallel>], iteration_bounds = array<i64: 1>, scalar_prefetch = 0 : i64, scratch_operands = 0 : i64, tpu.core_type = #tpu.core_type<tc>, window_params = [{transform_indices = @transform_0, window_bounds = array<i64: 8, 8>}, {transform_indices = @transform_1, window_bounds = array<i64: 8, 4>}, {transform_indices = @transform_2, window_bounds = array<i64: 8, 4>}, {pipeline_mode = #tpu.pipeline_mode<synchronous>, transform_indices = @transform_3, window_bounds = array<i64: 8, 32>}, {pipeline_mode = #tpu.pipeline_mode<synchronous>, transform_indices = @transform_4, window_bounds = array<i64: 4, 32>}, {pipeline_mode = #tpu.pipeline_mode<synchronous>, transform_indices = @transform_5, window_bounds = array<i64: 4, 32>}, {pipeline_mode = #tpu.pipeline_mode<synchronous>, transform_indices = @transform_6, window_bounds = array<i64: 1, 32>}, {pipeline_mode = #tpu.pipeline_mode<synchronous>, transform_indices = @transform_7, window_bounds = array<i64: 32, 32>}, {pipeline_mode = #tpu.pipeline_mode<synchronous>, transform_indices = @transform_8, window_bounds = array<i64: 1, 32>}, {pipeline_mode = #tpu.pipeline_mode<synchronous>, transform_indices = @transform_9, window_bounds = array<i64: 1, 32>}, {transform_indices = @transform_10, window_bounds = array<i64: 1, 1, 8>}]} {
    %c0 = arith.constant 0 : index
    %c0_0 = arith.constant 0 : index
    %0 = vector.load %arg1[%c0, %c0_0] : memref<8x8xf32, #tpu.memory_space<vmem>>, vector<8x8xf32>
    %c0_1 = arith.constant 0 : index
    %c0_2 = arith.constant 0 : index
    %1 = vector.load %arg4[%c0_1, %c0_2] : memref<8x32xf32, #tpu.memory_space<vmem>>, vector<8x32xf32>
    %cst = arith.constant dense<0.000000e+00> : vector<8x32xf32>
    %2 = tpu.matmul %0, %1, %cst {dimension_numbers = #tpu.dot_dimension_numbers<[1], [0], [0], [1], [0, 0, 1, 1], [], []>} : vector<8x8xf32>, vector<8x32xf32>, vector<8x32xf32> -> vector<8x32xf32>
    %c0_3 = arith.constant 0 : index
    %c0_4 = arith.constant 0 : index
    %3 = vector.load %arg2[%c0_3, %c0_4] : memref<8x4xf32, #tpu.memory_space<vmem>>, vector<8x4xf32>
    %c0_5 = arith.constant 0 : index
    %c0_6 = arith.constant 0 : index
    %4 = vector.load %arg5[%c0_5, %c0_6] : memref<4x32xf32, #tpu.memory_space<vmem>>, vector<4x32xf32>
    %cst_7 = arith.constant dense<0.000000e+00> : vector<8x32xf32>
    %5 = tpu.matmul %3, %4, %cst_7 {dimension_numbers = #tpu.dot_dimension_numbers<[1], [0], [0], [1], [0, 0, 1, 1], [], []>} : vector<8x4xf32>, vector<4x32xf32>, vector<8x32xf32> -> vector<8x32xf32>
    %6 = arith.addf %2, %5 : vector<8x32xf32>
    %c0_8 = arith.constant 0 : index
    %c0_9 = arith.constant 0 : index
    %7 = vector.load %arg3[%c0_8, %c0_9] : memref<8x4xf32, #tpu.memory_space<vmem>>, vector<8x4xf32>
    %c0_10 = arith.constant 0 : index
    %c0_11 = arith.constant 0 : index
    %8 = vector.load %arg6[%c0_10, %c0_11] : memref<4x32xf32, #tpu.memory_space<vmem>>, vector<4x32xf32>
    %cst_12 = arith.constant dense<0.000000e+00> : vector<8x32xf32>
    %9 = tpu.matmul %7, %8, %cst_12 {dimension_numbers = #tpu.dot_dimension_numbers<[1], [0], [0], [1], [0, 0, 1, 1], [], []>} : vector<8x4xf32>, vector<4x32xf32>, vector<8x32xf32> -> vector<8x32xf32>
    %10 = arith.addf %6, %9 : vector<8x32xf32>
    %c0_13 = arith.constant 0 : index
    %c0_14 = arith.constant 0 : index
    %11 = vector.load %arg7[%c0_13, %c0_14] : memref<1x32xf32, #tpu.memory_space<vmem>>, vector<1x32xf32>
    %12 = vector.broadcast %11 : vector<1x32xf32> to vector<8x32xf32>
    %13 = arith.addf %10, %12 : vector<8x32xf32>
    %cst_15 = arith.constant 0.000000e+00 : f32
    %14 = vector.broadcast %cst_15 : f32 to vector<8x32xf32>
    %15 = arith.maximumf %13, %14 : vector<8x32xf32>
    %c0_16 = arith.constant 0 : index
    %c0_17 = arith.constant 0 : index
    %16 = vector.load %arg8[%c0_16, %c0_17] : memref<32x32xf32, #tpu.memory_space<vmem>>, vector<32x32xf32>
    %cst_18 = arith.constant dense<0.000000e+00> : vector<8x32xf32>
    %17 = tpu.matmul %15, %16, %cst_18 {dimension_numbers = #tpu.dot_dimension_numbers<[1], [0], [0], [1], [0, 0, 1, 1], [], []>} : vector<8x32xf32>, vector<32x32xf32>, vector<8x32xf32> -> vector<8x32xf32>
    %c0_19 = arith.constant 0 : index
    %c0_20 = arith.constant 0 : index
    %18 = vector.load %arg9[%c0_19, %c0_20] : memref<1x32xf32, #tpu.memory_space<vmem>>, vector<1x32xf32>
    %19 = vector.broadcast %18 : vector<1x32xf32> to vector<8x32xf32>
    %20 = arith.addf %17, %19 : vector<8x32xf32>
    %cst_21 = arith.constant 0.000000e+00 : f32
    %21 = vector.broadcast %cst_21 : f32 to vector<8x32xf32>
    %22 = arith.maximumf %20, %21 : vector<8x32xf32>
    %c0_22 = arith.constant 0 : index
    %c0_23 = arith.constant 0 : index
    %23 = vector.load %arg10[%c0_22, %c0_23] : memref<1x32xf32, #tpu.memory_space<vmem>>, vector<1x32xf32>
    %cst_24 = arith.constant dense<0.000000e+00> : vector<1x8xf32>
    %24 = tpu.matmul %23, %22, %cst_24 {dimension_numbers = #tpu.dot_dimension_numbers<[1], [1], [0], [0], [0, 0, 1, 0], [], []>} : vector<1x32xf32>, vector<8x32xf32>, vector<1x8xf32> -> vector<1x8xf32>
    %25 = vector.shape_cast %24 : vector<1x8xf32> to vector<1x1x8xf32>
    %c0_25 = arith.constant 0 : index
    %c0_26 = arith.constant 0 : index
    %c0_27 = arith.constant 0 : index
    %26 = vector.load %arg11[%c0_25, %c0_26, %c0_27] : memref<1x1x8xf32, #tpu.memory_space<vmem>>, vector<1x1x8xf32>
    tpu.vector_store %arg11[%c0_25, %c0_26, %c0_27], %25 {strides = array<i32>} : memref<1x1x8xf32, #tpu.memory_space<vmem>>, vector<1x1x8xf32>,
    return
  }
  func.func @transform_0(%arg0: i32) -> (i32, i32) {
    %c0_i32 = arith.constant 0 : i32
    %c0_i32_0 = arith.constant 0 : i32
    return %arg0, %c0_i32 : i32, i32
  }
  func.func @transform_1(%arg0: i32) -> (i32, i32) {
    %c0_i32 = arith.constant 0 : i32
    %c0_i32_0 = arith.constant 0 : i32
    return %arg0, %c0_i32 : i32, i32
  }
  func.func @transform_2(%arg0: i32) -> (i32, i32) {
    %c0_i32 = arith.constant 0 : i32
    %c0_i32_0 = arith.constant 0 : i32
    return %arg0, %c0_i32 : i32, i32
  }
  func.func @transform_3(%arg0: i32) -> (i32, i32) {
    %c0_i32 = arith.constant 0 : i32
    %c0_i32_0 = arith.constant 0 : i32
    %c0_i32_1 = arith.constant 0 : i32
    return %c0_i32, %c0_i32_0 : i32, i32
  }
  func.func @transform_4(%arg0: i32) -> (i32, i32) {
    %c0_i32 = arith.constant 0 : i32
    %c0_i32_0 = arith.constant 0 : i32
    %c0_i32_1 = arith.constant 0 : i32
    return %c0_i32, %c0_i32_0 : i32, i32
  }
  func.func @transform_5(%arg0: i32) -> (i32, i32) {
    %c0_i32 = arith.constant 0 : i32
    %c0_i32_0 = arith.constant 0 : i32
    %c0_i32_1 = arith.constant 0 : i32
    return %c0_i32, %c0_i32_0 : i32, i32
  }
  func.func @transform_6(%arg0: i32) -> (i32, i32) {
    %c0_i32 = arith.constant 0 : i32
    %c0_i32_0 = arith.constant 0 : i32
    %c0_i32_1 = arith.constant 0 : i32
    return %c0_i32, %c0_i32_0 : i32, i32
  }
  func.func @transform_7(%arg0: i32) -> (i32, i32) {
    %c0_i32 = arith.constant 0 : i32
    %c0_i32_0 = arith.constant 0 : i32
    %c0_i32_1 = arith.constant 0 : i32
    return %c0_i32, %c0_i32_0 : i32, i32
  }
  func.func @transform_8(%arg0: i32) -> (i32, i32) {
    %c0_i32 = arith.constant 0 : i32
    %c0_i32_0 = arith.constant 0 : i32
    %c0_i32_1 = arith.constant 0 : i32
    return %c0_i32, %c0_i32_0 : i32, i32
  }
  func.func @transform_9(%arg0: i32) -> (i32, i32) {
    %c0_i32 = arith.constant 0 : i32
    %c0_i32_0 = arith.constant 0 : i32
    %c0_i32_1 = arith.constant 0 : i32
    return %c0_i32, %c0_i32_0 : i32, i32
  }
  func.func @transform_10(%arg0: i32) -> (i32, i32, i32) {
    %c0_i32 = arith.constant 0 : i32
    %c0_i32_0 = arith.constant 0 : i32
    %c0_i32_1 = arith.constant 0 : i32
    return %arg0, %c0_i32, %c0_i32_0 : i32, i32, i32
  }
}

</mosaic_0001>

<llo_original>
// kernel: tpu_custom_call.1
$region0: #{tpu_custom_call.1}
  #allocation0 [shape = 'u32[]', space=smem, size = 0x4, offset = 0x4, fixed_abs, tag = 'smem constant byte address 0x4 - core index']
  #allocation1 [shape = 'u32[144,128]{1,0:T(1,128)}', space=vmem, size = 0x12000, scoped, tag = 'internal scratch']
  %s0 = inlined_call_operand.vmem [shape: f32[8,8], index: 0, kind: input, shape index: {}]
  %s1 = inlined_call_operand.vmem [shape: f32[8,4], index: 1, kind: input, shape index: {}]
  %s2 = inlined_call_operand.vmem [shape: f32[8,4], index: 2, kind: input, shape index: {}]
  %s3 = inlined_call_operand.vmem [shape: f32[8,32], index: 3, kind: input, shape index: {}]
  %s4 = inlined_call_operand.hbm [shape: f32[4,32], index: 4, kind: input, shape index: {}]
  %s5 = inlined_call_operand.hbm [shape: f32[4,32], index: 5, kind: input, shape index: {}]
  %s6 = inlined_call_operand.vmem [shape: f32[1,32], index: 6, kind: input, shape index: {}]
  %s7 = inlined_call_operand.vmem [shape: f32[32,32], index: 7, kind: input, shape index: {}]
  %s8 = inlined_call_operand.vmem [shape: f32[1,32], index: 8, kind: input, shape index: {}]
  %s9 = inlined_call_operand.vmem [shape: f32[1,32], index: 9, kind: input, shape index: {}]
  %s10 = inlined_call_operand.hbm [shape: f32[1,1,8], index: 10, kind: output, shape index: {}]
  %s11 = sld [smem:[#allocation0]]
  $region58: #{tpu_custom_call.1} parent=0
    _
  %s13 = ssub.s32 1, %s11
  %s14 = scalar_select 0, %s13, %s11
  $region1: #{tpu_custom_call.1} parent=0
    #allocation2 [shape = 'u8[2048]{0}', space=vmem, size = 0x800, scoped, tag = 'input window, operand 4, single buffered']
    #allocation3 [shape = 's32[1]{0}', space=sflag, size = 0x4, scoped, tag = 'scoped memory for tpu_custom_call.1']
    #allocation4 [shape = 's32[1]{0}', space=sflag, size = 0x4, scoped, tag = 'scoped memory for tpu_custom_call.1']
    #allocation5 [shape = 'u8[2048]{0}', space=vmem, size = 0x800, scoped, tag = 'input window, operand 5, single buffered']
    #allocation6 [shape = 's32[1]{0}', space=sflag, size = 0x4, scoped, tag = 'scoped memory for tpu_custom_call.1']
    #allocation7 [shape = 'u8[512]{0}', space=vmem, size = 0x400, scoped, tag = 'output window, operand 0, single buffered']
    %15 = vsyncpa [#allocation3], 0
    %16 = vsyncpa [#allocation6], 0
    %17 = vsyncpa [#allocation4], 0
    // Predicated region
    $region2: #{tpu_custom_call.1} parent=1 // pred_check
      _
    $region3: #{tpu_custom_call.1} parent=1 // pred_check_branch
      %19 = sbr.rel (0) target = $region5
    $region4: #{tpu_custom_call.1} parent=1 // pred_region
      _
    $region5: #{tpu_custom_call.1} parent=1 // pred_fallthru
      _
    // Predicated region
    $region6: #{tpu_custom_call.1} parent=1 // pred_check
      _
    $region7: #{tpu_custom_call.1} parent=1 // pred_check_branch
      %21 = sbr.rel (0) target = $region9
    $region8: #{tpu_custom_call.1} parent=1 // pred_region
      _
    $region9: #{tpu_custom_call.1} parent=1 // pred_fallthru
      _
    // Predicated region
    $region10: #{tpu_custom_call.1} parent=1 // pred_check
      _
    $region11: #{tpu_custom_call.1} parent=1 // pred_check_branch
      %23 = sbr.rel (0) target = $region13
    $region12: #{tpu_custom_call.1} parent=1 // pred_region
      _
    $region13: #{tpu_custom_call.1} parent=1 // pred_fallthru
      _
    // Predicated region
    $region14: #{tpu_custom_call.1} parent=1 // pred_check
      _
    $region15: #{tpu_custom_call.1} parent=1 // pred_check_branch
      %25 = sbr.rel (0) target = $region17
    $region16: #{tpu_custom_call.1} parent=1 // pred_region
      _
    $region17: #{tpu_custom_call.1} parent=1 // pred_fallthru
      _
    // Predicated region
    $region18: #{tpu_custom_call.1} parent=1 // pred_check
      _
    $region19: #{tpu_custom_call.1} parent=1 // pred_check_branch
      %27 = sbr.rel (0) target = $region21
    $region20: #{tpu_custom_call.1} parent=1 // pred_region
      %s29 = ssub.s32 64, 64
      %30 = vsyncadd [#allocation3], %s29
      %s32 = sshll.u32 [#allocation2], 4
      %s33 = int_to_ptr.vmem [resolvable:$true] %s32
      %35 = dma.hbm_to_vmem [thread:$0]  %s4, 64, %s33, [#allocation3]
    $region21: #{tpu_custom_call.1} parent=1 // pred_fallthru
      _
    // Predicated region
    $region22: #{tpu_custom_call.1} parent=1 // pred_check
      _
    $region23: #{tpu_custom_call.1} parent=1 // pred_check_branch
      %37 = sbr.rel (0) target = $region25
    $region24: #{tpu_custom_call.1} parent=1 // pred_region
      %s39 = ssub.s32 64, 64
      %40 = vsyncadd [#allocation6], %s39
      %s42 = sshll.u32 [#allocation5], 4
      %s43 = int_to_ptr.vmem [resolvable:$true] %s42
      %45 = dma.hbm_to_vmem [thread:$0]  %s5, 64, %s43, [#allocation6]
    $region25: #{tpu_custom_call.1} parent=1 // pred_fallthru
      _
    // Predicated region
    $region26: #{tpu_custom_call.1} parent=1 // pred_check
      _
    $region27: #{tpu_custom_call.1} parent=1 // pred_check_branch
      %47 = sbr.rel (0) target = $region29
    $region28: #{tpu_custom_call.1} parent=1 // pred_region
      _
    $region29: #{tpu_custom_call.1} parent=1 // pred_fallthru
      _
    // Predicated region
    $region30: #{tpu_custom_call.1} parent=1 // pred_check
      _
    $region31: #{tpu_custom_call.1} parent=1 // pred_check_branch
      %49 = sbr.rel (0) target = $region33
    $region32: #{tpu_custom_call.1} parent=1 // pred_region
      _
    $region33: #{tpu_custom_call.1} parent=1 // pred_fallthru
      _
    // Predicated region
    $region34: #{tpu_custom_call.1} parent=1 // pred_check
      _
    $region35: #{tpu_custom_call.1} parent=1 // pred_check_branch
      %51 = sbr.rel (0) target = $region37
    $region36: #{tpu_custom_call.1} parent=1 // pred_region
      _
    $region37: #{tpu_custom_call.1} parent=1 // pred_fallthru
      _
    // Predicated region
    $region38: #{tpu_custom_call.1} parent=1 // pred_check
      _
    $region39: #{tpu_custom_call.1} parent=1 // pred_check_branch
      %53 = sbr.rel (0) target = $region41
    $region40: #{tpu_custom_call.1} parent=1 // pred_region
      _
    $region41: #{tpu_custom_call.1} parent=1 // pred_fallthru
      _
    // Predicated region
    $region42: #{tpu_custom_call.1} parent=1 // pred_check
      _
    $region43: #{tpu_custom_call.1} parent=1 // pred_check_branch
      %55 = sbr.rel (0) target = $region45
    $region44: #{tpu_custom_call.1} parent=1 // pred_region
      %56 = dma.done [#allocation3], 64
    $region45: #{tpu_custom_call.1} parent=1 // pred_fallthru
      _
    // Predicated region
    $region46: #{tpu_custom_call.1} parent=1 // pred_check
      _
    $region47: #{tpu_custom_call.1} parent=1 // pred_check_branch
      %58 = sbr.rel (0) target = $region49
    $region48: #{tpu_custom_call.1} parent=1 // pred_region
      %59 = dma.done [#allocation6], 64
    $region49: #{tpu_custom_call.1} parent=1 // pred_fallthru
      _
    %v60 = vld [vmem:[%s0] sm:$0xff]
    %v61 = vld [vmem:[%s3] sm:$0xff]
    %v62 = vld [vmem:[%s1] sm:$0xff]
    %v63 = vld [vmem:[#allocation2] sm:$0xf]
    %vm64 = vcmask 31744
    %v66 = vsel %vm64, %v62, 0
    %vm68 = vcmask 1043456
    %v70 = vsel %vm68, %v63, 0
    %72 = vmatprep.subr.mxu0 0.0
    %73 = vmatpush1.msra.mxu0 %v70
    %74 = vmatprep.subr.mxu0 0.0
    %75 = vmatpush1.msra.mxu0 0.0
    %76 = vmatprep.subr.mxu0 0.0
    %77 = vmatpush1.msra.mxu0 0.0
    %78 = vmatprep.subr.mxu0 0.0
    %79 = vmatpush1.msra.mxu0 0.0
    %80 = vmatprep.subr.mxu0 0.0
    %81 = vmatpush1.msra.mxu0 0.0
    %82 = vmatprep.subr.mxu0 0.0
    %83 = vmatpush1.msra.mxu0 0.0
    %84 = vmatprep.subr.mxu0 0.0
    %85 = vmatpush1.msra.mxu0 0.0
    %86 = vmatprep.subr.mxu0 0.0
    %87 = vmatpush1.msra.mxu0 0.0
    %88 = vmatprep.subr.mxu0 0.0
    %89 = vmatpush1.msra.mxu0 0.0
    %90 = vmatprep.subr.mxu0 0.0
    %91 = vmatpush1.msra.mxu0 0.0
    %92 = vmatprep.subr.mxu0 0.0
    %93 = vmatpush1.msra.mxu0 0.0
    %94 = vmatprep.subr.mxu0 0.0
    %95 = vmatpush1.msra.mxu0 0.0
    %96 = vmatprep.subr.mxu0 0.0
    %97 = vmatpush1.msra.mxu0 0.0
    %98 = vmatprep.subr.mxu0 0.0
    %99 = vmatpush1.msra.mxu0 0.0
    %100 = vmatprep.subr.mxu0 0.0
    %101 = vmatpush1.msra.mxu0 0.0
    %102 = vmatprep.subr.mxu0 0.0
    %103 = vmatpush1.msra.mxu0 0.0
    %104 = vmatprep.subr.mxu0 0.0
    %105 = vmatpush1.msra.mxu0 0.0
    %106 = vmatprep.subr.mxu0 0.0
    %107 = vmatpush1.msra.mxu0 0.0
    %108 = vmatprep.subr.mxu0 0.0
    %109 = vmatpush1.msra.mxu0 0.0
    %110 = vmatprep.subr.mxu0 0.0
    %111 = vmatpush1.msra.mxu0 0.0
    %112 = vmatprep.subr.mxu0 0.0
    %113 = vmatpush1.msra.mxu0 0.0
    %114 = vmatprep.subr.mxu0 0.0
    %115 = vmatpush1.msra.mxu0 0.0
    %116 = vmatprep.subr.mxu0 0.0
    %117 = vmatpush1.msra.mxu0 0.0
    %118 = vmatprep.subr.mxu0 0.0
    %119 = vmatpush1.msra.mxu0 0.0
    %120 = vmatprep.subr.mxu0 0.0
    %121 = vmatpush1.msra.mxu0 0.0
    %122 = vmatprep.subr.mxu0 0.0
    %123 = vmatpush1.msra.mxu0 0.0
    %124 = vmatprep.subr.mxu0 0.0
    %125 = vmatpush1.msra.mxu0 0.0
    %126 = vmatprep.subr.mxu0 0.0
    %127 = vmatpush1.msra.mxu0 0.0
    %128 = vmatprep.subr.mxu0 0.0
    %129 = vmatpush1.msra.mxu0 0.0
    %130 = vmatprep.subr.mxu0 0.0
    %131 = vmatpush1.msra.mxu0 0.0
    %132 = vmatprep.subr.mxu0 0.0
    %133 = vmatpush1.msra.mxu0 0.0
    %134 = vmatprep.subr.mxu0 0.0
    %135 = vmatpush1.msra.mxu0 0.0
    %136 = vmatprep.mubr.f32.mxu0 0.0
    %137 = vmatmul.mubr.f32.gmra.mrb[0].mxu0 %v66
    %v138 = vpop.f32.mrb[0].mxu0
    %v139 = vadd.f32 0.0, %v138
    %v140 = vpop.f32.mrb[0].mxu0
    %141 = vdwg.mxu0
    %vm142 = vcmask 64512
    %v144 = vsel %vm142, %v60, 0
    %146 = vmatprep.subr.mxu0 0.0
    %147 = vmatpush1.msra.mxu0 %v61
    %148 = vmatprep.subr.mxu0 0.0
    %149 = vmatpush1.msra.mxu0 0.0
    %150 = vmatprep.subr.mxu0 0.0
    %151 = vmatpush1.msra.mxu0 0.0
    %152 = vmatprep.subr.mxu0 0.0
    %153 = vmatpush1.msra.mxu0 0.0
    %154 = vmatprep.subr.mxu0 0.0
    %155 = vmatpush1.msra.mxu0 0.0
    %156 = vmatprep.subr.mxu0 0.0
    %157 = vmatpush1.msra.mxu0 0.0
    %158 = vmatprep.subr.mxu0 0.0
    %159 = vmatpush1.msra.mxu0 0.0
    %160 = vmatprep.subr.mxu0 0.0
    %161 = vmatpush1.msra.mxu0 0.0
    %162 = vmatprep.subr.mxu0 0.0
    %163 = vmatpush1.msra.mxu0 0.0
    %164 = vmatprep.subr.mxu0 0.0
    %165 = vmatpush1.msra.mxu0 0.0
    %166 = vmatprep.subr.mxu0 0.0
    %167 = vmatpush1.msra.mxu0 0.0
    %168 = vmatprep.subr.mxu0 0.0
    %169 = vmatpush1.msra.mxu0 0.0
    %170 = vmatprep.subr.mxu0 0.0
    %171 = vmatpush1.msra.mxu0 0.0
    %172 = vmatprep.subr.mxu0 0.0
    %173 = vmatpush1.msra.mxu0 0.0
    %174 = vmatprep.subr.mxu0 0.0
    %175 = vmatpush1.msra.mxu0 0.0
    %176 = vmatprep.subr.mxu0 0.0
    %177 = vmatpush1.msra.mxu0 0.0
    %178 = vmatprep.subr.mxu0 0.0
    %179 = vmatpush1.msra.mxu0 0.0
    %180 = vmatprep.subr.mxu0 0.0
    %181 = vmatpush1.msra.mxu0 0.0
    %182 = vmatprep.subr.mxu0 0.0
    %183 = vmatpush1.msra.mxu0 0.0
    %184 = vmatprep.subr.mxu0 0.0
    %185 = vmatpush1.msra.mxu0 0.0
    %186 = vmatprep.subr.mxu0 0.0
    %187 = vmatpush1.msra.mxu0 0.0
    %188 = vmatprep.subr.mxu0 0.0
    %189 = vmatpush1.msra.mxu0 0.0
    %190 = vmatprep.subr.mxu0 0.0
    %191 = vmatpush1.msra.mxu0 0.0
    %192 = vmatprep.subr.mxu0 0.0
    %193 = vmatpush1.msra.mxu0 0.0
    %194 = vmatprep.subr.mxu0 0.0
    %195 = vmatpush1.msra.mxu0 0.0
    %196 = vmatprep.subr.mxu0 0.0
    %197 = vmatpush1.msra.mxu0 0.0
    %198 = vmatprep.subr.mxu0 0.0
    %199 = vmatpush1.msra.mxu0 0.0
    %200 = vmatprep.subr.mxu0 0.0
    %201 = vmatpush1.msra.mxu0 0.0
    %202 = vmatprep.subr.mxu0 0.0
    %203 = vmatpush1.msra.mxu0 0.0
    %204 = vmatprep.subr.mxu0 0.0
    %205 = vmatpush1.msra.mxu0 0.0
    %206 = vmatprep.subr.mxu0 0.0
    %207 = vmatpush1.msra.mxu0 0.0
    %208 = vmatprep.subr.mxu0 0.0
    %209 = vmatpush1.msra.mxu0 0.0
    %210 = vmatprep.mubr.f32.mxu0 0.0
    %211 = vmatmul.mubr.f32.gmra.mrb[0].mxu0 %v144
    %v212 = vpop.f32.mrb[0].mxu0
    %v213 = vadd.f32 %v139, %v212
    %v214 = vpop.f32.mrb[0].mxu0
    %215 = vdwg.mxu0
    %v216 = vld [vmem:[%s2] sm:$0xff]
    %v217 = vld [vmem:[#allocation5] sm:$0xf]
    %v219 = vsel %vm64, %v216, 0
    %v222 = vsel %vm68, %v217, 0
    %224 = vmatprep.subr.mxu0 0.0
    %225 = vmatpush1.msra.mxu0 %v222
    %226 = vmatprep.subr.mxu0 0.0
    %227 = vmatpush1.msra.mxu0 0.0
    %228 = vmatprep.subr.mxu0 0.0
    %229 = vmatpush1.msra.mxu0 0.0
    %230 = vmatprep.subr.mxu0 0.0
    %231 = vmatpush1.msra.mxu0 0.0
    %232 = vmatprep.subr.mxu0 0.0
    %233 = vmatpush1.msra.mxu0 0.0
    %234 = vmatprep.subr.mxu0 0.0
    %235 = vmatpush1.msra.mxu0 0.0
    %236 = vmatprep.subr.mxu0 0.0
    %237 = vmatpush1.msra.mxu0 0.0
    %238 = vmatprep.subr.mxu0 0.0
    %239 = vmatpush1.msra.mxu0 0.0
    %240 = vmatprep.subr.mxu0 0.0
    %241 = vmatpush1.msra.mxu0 0.0
    %242 = vmatprep.subr.mxu0 0.0
    %243 = vmatpush1.msra.mxu0 0.0
    %244 = vmatprep.subr.mxu0 0.0
    %245 = vmatpush1.msra.mxu0 0.0
    %246 = vmatprep.subr.mxu0 0.0
    %247 = vmatpush1.msra.mxu0 0.0
    %248 = vmatprep.subr.mxu0 0.0
    %249 = vmatpush1.msra.mxu0 0.0
    %250 = vmatprep.subr.mxu0 0.0
    %251 = vmatpush1.msra.mxu0 0.0
    %252 = vmatprep.subr.mxu0 0.0
    %253 = vmatpush1.msra.mxu0 0.0
    %254 = vmatprep.subr.mxu0 0.0
    %255 = vmatpush1.msra.mxu0 0.0
    %256 = vmatprep.subr.mxu0 0.0
    %257 = vmatpush1.msra.mxu0 0.0
    %258 = vmatprep.subr.mxu0 0.0
    %259 = vmatpush1.msra.mxu0 0.0
    %260 = vmatprep.subr.mxu0 0.0
    %261 = vmatpush1.msra.mxu0 0.0
    %262 = vmatprep.subr.mxu0 0.0
    %263 = vmatpush1.msra.mxu0 0.0
    %264 = vmatprep.subr.mxu0 0.0
    %265 = vmatpush1.msra.mxu0 0.0
    %266 = vmatprep.subr.mxu0 0.0
    %267 = vmatpush1.msra.mxu0 0.0
    %268 = vmatprep.subr.mxu0 0.0
    %269 = vmatpush1.msra.mxu0 0.0
    %270 = vmatprep.subr.mxu0 0.0
    %271 = vmatpush1.msra.mxu0 0.0
    %272 = vmatprep.subr.mxu0 0.0
    %273 = vmatpush1.msra.mxu0 0.0
    %274 = vmatprep.subr.mxu0 0.0
    %275 = vmatpush1.msra.mxu0 0.0
    %276 = vmatprep.subr.mxu0 0.0
    %277 = vmatpush1.msra.mxu0 0.0
    %278 = vmatprep.subr.mxu0 0.0
    %279 = vmatpush1.msra.mxu0 0.0
    %280 = vmatprep.subr.mxu0 0.0
    %281 = vmatpush1.msra.mxu0 0.0
    %282 = vmatprep.subr.mxu0 0.0
    %283 = vmatpush1.msra.mxu0 0.0
    %284 = vmatprep.subr.mxu0 0.0
    %285 = vmatpush1.msra.mxu0 0.0
    %286 = vmatprep.subr.mxu0 0.0
    %287 = vmatpush1.msra.mxu0 0.0
    %288 = vmatprep.mubr.f32.mxu0 0.0
    %289 = vmatmul.mubr.f32.gmra.mrb[0].mxu0 %v219
    %v290 = vpop.f32.mrb[0].mxu0
    %v291 = vadd.f32 0.0, %v290
    %v292 = vpop.f32.mrb[0].mxu0
    %293 = vdwg.mxu0
    %v294 = vadd.f32 %v213, %v291
    %v295 = vld [vmem:[%s6] sm:$0x1]
    %v297 = vlaneseq
    %v298 = vshrl.u32 %v297, 7
    %v299 = vsub.s32 0, %v298
    %v300 = vrot.slane %v295, %v299
    %v302 = vadd.f32 %v294, %v300
    %v303 = vmax.f32 %v302, 0.0
    %v304 = vld [vmem:[%s7] sm:$0xff]
    %v305 = vld [vmem:[%s7 + $0x8] sm:$0xff]
    %v306 = vld [vmem:[%s7 + $0x10] sm:$0xff]
    %v307 = vld [vmem:[%s7 + $0x18] sm:$0xff]
    %v308 = vld [vmem:[%s8] sm:$0x1]
    %v310 = vlaneseq
    %v311 = vshrl.u32 %v310, 7
    %v312 = vsub.s32 0, %v311
    %v313 = vrot.slane %v308, %v312
    %vm315 = vcmask 261120
    %v317 = vsel %vm315, %v303, 0
    %319 = vmatprep.subr.mxu0 0.0
    %320 = vmatpush1.msra.mxu0 %v304
    %321 = vmatprep.subr.mxu0 0.0
    %322 = vmatpush1.msra.mxu0 %v305
    %323 = vmatprep.subr.mxu0 0.0
    %324 = vmatpush1.msra.mxu0 %v306
    %325 = vmatprep.subr.mxu0 0.0
    %326 = vmatpush1.msra.mxu0 %v307
    %327 = vmatprep.subr.mxu0 0.0
    %328 = vmatpush1.msra.mxu0 0.0
    %329 = vmatprep.subr.mxu0 0.0
    %330 = vmatpush1.msra.mxu0 0.0
    %331 = vmatprep.subr.mxu0 0.0
    %332 = vmatpush1.msra.mxu0 0.0
    %333 = vmatprep.subr.mxu0 0.0
    %334 = vmatpush1.msra.mxu0 0.0
    %335 = vmatprep.subr.mxu0 0.0
    %336 = vmatpush1.msra.mxu0 0.0
    %337 = vmatprep.subr.mxu0 0.0
    %338 = vmatpush1.msra.mxu0 0.0
    %339 = vmatprep.subr.mxu0 0.0
    %340 = vmatpush1.msra.mxu0 0.0
    %341 = vmatprep.subr.mxu0 0.0
    %342 = vmatpush1.msra.mxu0 0.0
    %343 = vmatprep.subr.mxu0 0.0
    %344 = vmatpush1.msra.mxu0 0.0
    %345 = vmatprep.subr.mxu0 0.0
    %346 = vmatpush1.msra.mxu0 0.0
    %347 = vmatprep.subr.mxu0 0.0
    %348 = vmatpush1.msra.mxu0 0.0
    %349 = vmatprep.subr.mxu0 0.0
    %350 = vmatpush1.msra.mxu0 0.0
    %351 = vmatprep.subr.mxu0 0.0
    %352 = vmatpush1.msra.mxu0 0.0
    %353 = vmatprep.subr.mxu0 0.0
    %354 = vmatpush1.msra.mxu0 0.0
    %355 = vmatprep.subr.mxu0 0.0
    %356 = vmatpush1.msra.mxu0 0.0
    %357 = vmatprep.subr.mxu0 0.0
    %358 = vmatpush1.msra.mxu0 0.0
    %359 = vmatprep.subr.mxu0 0.0
    %360 = vmatpush1.msra.mxu0 0.0
    %361 = vmatprep.subr.mxu0 0.0
    %362 = vmatpush1.msra.mxu0 0.0
    %363 = vmatprep.subr.mxu0 0.0
    %364 = vmatpush1.msra.mxu0 0.0
    %365 = vmatprep.subr.mxu0 0.0
    %366 = vmatpush1.msra.mxu0 0.0
    %367 = vmatprep.subr.mxu0 0.0
    %368 = vmatpush1.msra.mxu0 0.0
    %369 = vmatprep.subr.mxu0 0.0
    %370 = vmatpush1.msra.mxu0 0.0
    %371 = vmatprep.subr.mxu0 0.0
    %372 = vmatpush1.msra.mxu0 0.0
    %373 = vmatprep.subr.mxu0 0.0
    %374 = vmatpush1.msra.mxu0 0.0
    %375 = vmatprep.subr.mxu0 0.0
    %376 = vmatpush1.msra.mxu0 0.0
    %377 = vmatprep.subr.mxu0 0.0
    %378 = vmatpush1.msra.mxu0 0.0
    %379 = vmatprep.subr.mxu0 0.0
    %380 = vmatpush1.msra.mxu0 0.0
    %381 = vmatprep.subr.mxu0 0.0
    %382 = vmatpush1.msra.mxu0 0.0
    %383 = vmatprep.mubr.f32.mxu0 0.0
    %384 = vmatmul.mubr.f32.gmra.mrb[0].mxu0 %v317
    %v385 = vpop.f32.mrb[0].mxu0
    %v386 = vadd.f32 %v313, %v385
    %v387 = vpop.f32.mrb[0].mxu0
    %388 = vdwg.mxu0
    %v389 = vmax.f32 %v386, 0.0
    %v390 = vld [vmem:[%s9] sm:$0x1]
    %v392 = vsel %vm315, %v390, 0
    %v395 = vsel %vm315, %v389, 0
    %397 = vmatprep.subr.mxu0 0.0
    %398 = vmatpush1.xpose.msra.mxu0 %v395
    %399 = vmatprep.subr.mxu0 0.0
    %400 = vmatpush1.xpose.msra.mxu0 0.0
    %401 = vmatprep.subr.mxu0 0.0
    %402 = vmatpush1.xpose.msra.mxu0 0.0
    %403 = vmatprep.subr.mxu0 0.0
    %404 = vmatpush1.xpose.msra.mxu0 0.0
    %405 = vmatprep.subr.mxu0 0.0
    %406 = vmatpush1.xpose.msra.mxu0 0.0
    %407 = vmatprep.subr.mxu0 0.0
    %408 = vmatpush1.xpose.msra.mxu0 0.0
    %409 = vmatprep.subr.mxu0 0.0
    %410 = vmatpush1.xpose.msra.mxu0 0.0
    %411 = vmatprep.subr.mxu0 0.0
    %412 = vmatpush1.xpose.msra.mxu0 0.0
    %413 = vmatprep.subr.mxu0 0.0
    %414 = vmatpush1.xpose.msra.mxu0 0.0
    %415 = vmatprep.subr.mxu0 0.0
    %416 = vmatpush1.xpose.msra.mxu0 0.0
    %417 = vmatprep.subr.mxu0 0.0
    %418 = vmatpush1.xpose.msra.mxu0 0.0
    %419 = vmatprep.subr.mxu0 0.0
    %420 = vmatpush1.xpose.msra.mxu0 0.0
    %421 = vmatprep.subr.mxu0 0.0
    %422 = vmatpush1.xpose.msra.mxu0 0.0
    %423 = vmatprep.subr.mxu0 0.0
    %424 = vmatpush1.xpose.msra.mxu0 0.0
    %425 = vmatprep.subr.mxu0 0.0
    %426 = vmatpush1.xpose.msra.mxu0 0.0
    %427 = vmatprep.subr.mxu0 0.0
    %428 = vmatpush1.xpose.msra.mxu0 0.0
    %429 = vmatprep.subr.mxu0 0.0
    %430 = vmatpush1.xpose.msra.mxu0 0.0
    %431 = vmatprep.subr.mxu0 0.0
    %432 = vmatpush1.xpose.msra.mxu0 0.0
    %433 = vmatprep.subr.mxu0 0.0
    %434 = vmatpush1.xpose.msra.mxu0 0.0
    %435 = vmatprep.subr.mxu0 0.0
    %436 = vmatpush1.xpose.msra.mxu0 0.0
    %437 = vmatprep.subr.mxu0 0.0
    %438 = vmatpush1.xpose.msra.mxu0 0.0
    %439 = vmatprep.subr.mxu0 0.0
    %440 = vmatpush1.xpose.msra.mxu0 0.0
    %441 = vmatprep.subr.mxu0 0.0
    %442 = vmatpush1.xpose.msra.mxu0 0.0
    %443 = vmatprep.subr.mxu0 0.0
    %444 = vmatpush1.xpose.msra.mxu0 0.0
    %445 = vmatprep.subr.mxu0 0.0
    %446 = vmatpush1.xpose.msra.mxu0 0.0
    %447 = vmatprep.subr.mxu0 0.0
    %448 = vmatpush1.xpose.msra.mxu0 0.0
    %449 = vmatprep.subr.mxu0 0.0
    %450 = vmatpush1.xpose.msra.mxu0 0.0
    %451 = vmatprep.subr.mxu0 0.0
    %452 = vmatpush1.xpose.msra.mxu0 0.0
    %453 = vmatprep.subr.mxu0 0.0
    %454 = vmatpush1.xpose.msra.mxu0 0.0
    %455 = vmatprep.subr.mxu0 0.0
    %456 = vmatpush1.xpose.msra.mxu0 0.0
    %457 = vmatprep.subr.mxu0 0.0
    %458 = vmatpush1.xpose.msra.mxu0 0.0
    %459 = vmatprep.subr.mxu0 0.0
    %460 = vmatpush1.xpose.msra.mxu0 0.0
    %461 = vmatprep.mubr.f32.mxu0 0.0
    %462 = vmatmul.mubr.f32.gmra.mrb[0].mxu0 %v392
    %v463 = vpop.f32.mrb[0].mxu0
    %v464 = vadd.f32 0.0, %v463
    %v465 = vpop.f32.mrb[0].mxu0
    %466 = vdwg.mxu0
    %vm467 = vcmask 57344
    %468 = vst.msk [vmem:[#allocation7] sm:$0x1] %vm467, %v464
    // Predicated region
    $region50: #{tpu_custom_call.1} parent=1 // pred_check
      _
    $region51: #{tpu_custom_call.1} parent=1 // pred_check_branch
      %470 = sbr.rel (0) target = $region53
    $region52: #{tpu_custom_call.1} parent=1 // pred_region
      %s472 = ssub.s32 16, 16
      %473 = vsyncadd [#allocation4], %s472
      %s475 = sshll.u32 [#allocation7], 4
      %s476 = int_to_ptr.vmem [resolvable:$true] %s475
      %478 = dma.vmem_to_hbm [thread:$0]  %s476, 16, %s10, [#allocation4]
    $region53: #{tpu_custom_call.1} parent=1 // pred_fallthru
      _
    // Predicated region
    $region54: #{tpu_custom_call.1} parent=1 // pred_check
      _
    $region55: #{tpu_custom_call.1} parent=1 // pred_check_branch
      %480 = sbr.rel (0) target = $region57
    $region56: #{tpu_custom_call.1} parent=1 // pred_region
      %481 = dma.done [#allocation4], 16
    $region57: #{tpu_custom_call.1} parent=1 // pred_fallthru
      _
    %482 = vsyncpa [#allocation3], 1
    %483 = vsyncpa [#allocation6], 1
    %484 = vsyncpa [#allocation4], 1

</llo_original>
